<compile_context>
chip_gen: v6e
topology: v6e:2x2x1
jax: 0.10.0
libtpu: 0.0.40
codegen_flags: <defaults>
</compile_context>

<pallas_src>
import functools

import jax
import jax.numpy as jnp
from jax.experimental import pallas as pl
from jax.experimental.pallas import tpu as pltpu

LANE = 128
DEFAULT_TILE_BYTES = 4 * 1024 * 1024   # per-input streaming block target (~4 MiB)
ACC_ROWS = 64                          # rows in the min/max accumulator (ILP width)


# --------------------------------------------------------------------------- #
# Generation-aware configuration.                                             #
# --------------------------------------------------------------------------- #
@functools.lru_cache(maxsize=None)
def _chip_config():
    """Returns (vmem_limit_bytes, n_tensorcores) for the current TPU generation."""
    vmem_cap = 128 * 1024 * 1024
    is_v7 = False
    try:
        fn = getattr(pltpu, "get_tpu_info", None)
        if fn is not None:
            vmem_cap = int(getattr(fn(), "vmem_capacity_bytes", vmem_cap))
    except Exception:
        pass
    try:
        kind = jax.devices()[0].device_kind.lower()
        is_v7 = ("v7" in kind) or ("7x" in kind)
    except Exception:
        pass
    ncores = 2 if is_v7 else 1                                 # v7x: 2 TCs/chip
    vmem_limit = min(vmem_cap * 3 // 4, 100 * 1024 * 1024)     # v5e/v6e: ~96-100 MiB
    if is_v7:
        vmem_limit = min(vmem_limit, 48 * 1024 * 1024)         # v7x: 64 MiB physical
    return vmem_limit, ncores


def _pick_width(total):
    """Widest lane-dense last dim (multiple of 128) dividing the flat size."""
    for w in (8 * LANE, 4 * LANE, 2 * LANE, LANE):
        if total % w == 0:
            return w
    return None


def _pick_tile_rows(m, w, itemsize, tile_rows, vmem_limit):
    """Rows per streaming block: dtype-aware sublane multiple, ACC_ROWS aligned."""
    sub = {1: 32, 2: 16}.get(itemsize, 8)
    if tile_rows is None:
        target = min(DEFAULT_TILE_BYTES, vmem_limit // 12)
        tm = (target // (w * itemsize)) // sub * sub
    else:
        tm = (tile_rows // sub) * sub
    tm = max(sub, tm)
    m_pad = -(-m // sub) * sub
    tm = min(tm, m_pad)
    if tm > ACC_ROWS:
        tm = max(ACC_ROWS, (tm // ACC_ROWS) * ACC_ROWS)   # keep tm % ACC_ROWS == 0
    return tm


def _range_update(bmin, bmax, cur_min, cur_max, momentum):
    """Torch QuantAct running-stat rules (first-call / momentum / min-max)."""
    same = bmin == bmax
    if momentum == -1:
        upd_min = jnp.minimum(bmin, cur_min)
        upd_max = jnp.maximum(bmax, cur_max)
    else:
        upd_min = bmin * momentum + cur_min * (1.0 - momentum)
        upd_max = bmax * momentum + cur_max * (1.0 - momentum)
    new_min = jnp.where(same, bmin + cur_min, upd_min)
    new_max = jnp.where(same, bmax + cur_max, upd_max)
    return new_min, new_max


# --------------------------------------------------------------------------- #
# Fused path: min/max + running-stat + scale + fake-quant in one pallas_call. #
# --------------------------------------------------------------------------- #
def _fused_kernel(bmin_ref, bmax_ref, x_ref, o_ref, scale_ref, nmin_ref, nmax_ref,
                  *, n, momentum, update_stats):
    x = x_ref[...].astype(jnp.float32)

    zero = jnp.zeros((1, 1), jnp.float32)
    bmin = zero + bmin_ref[0]      # broadcast SMEM scalars onto the vector path
    bmax = zero + bmax_ref[0]

    if update_stats:
        # Rows first (cheap sublane/VPU mins), one cross-lane collapse at the end.
        cur_min = jnp.min(jnp.min(x, axis=0, keepdims=True), axis=1, keepdims=True)
        cur_max = jnp.max(jnp.max(x, axis=0, keepdims=True), axis=1, keepdims=True)
        new_min, new_max = _range_update(bmin, bmax, cur_min, cur_max, momentum)
    else:
        new_min, new_max = bmin, bmax

    # symmetric_linear_quantization_params
    sat = jnp.maximum(jnp.abs(new_min), jnp.abs(new_max))
    scale = jnp.maximum(sat, 1e-8) / n                    # (1,1)
    inv = 1.0 / scale                                     # single divide, hoisted

    # SymmetricQuantFunction: round(x/scale), clamp, dequantize.
    # TODO(synk): clamp convention [-n, n-1] kept from the reference kernel; verify
    #             against the repo's SymmetricQuantFunction if it uses [-n-1, n].
    q = jnp.clip(jnp.round(x * inv), -n, n - 1.0)
    o_ref[...] = (q * scale).astype(o_ref.dtype)

    scale_ref[...] = scale
    nmin_ref[...] = new_min
    nmax_ref[...] = new_max


def _fused_call(x2d, bmin, bmax, *, n, momentum, update_stats, vmem_limit):
    kernel = functools.partial(_fused_kernel, n=float(n), momentum=float(momentum),
                               update_stats=bool(update_stats))
    return pl.pallas_call(
        kernel,
        out_shape=(jax.ShapeDtypeStruct(x2d.shape, x2d.dtype),     # out (native dtype)
                   jax.ShapeDtypeStruct((1, 1), jnp.float32),      # scale
                   jax.ShapeDtypeStruct((1, 1), jnp.float32),      # new x_min
                   jax.ShapeDtypeStruct((1, 1), jnp.float32)),     # new x_max
        in_specs=[pl.BlockSpec(memory_space=pltpu.MemorySpace.SMEM),
                  pl.BlockSpec(memory_space=pltpu.MemorySpace.SMEM),
                  pl.BlockSpec(memory_space=pltpu.MemorySpace.VMEM)],
        compiler_params=pltpu.CompilerParams(vmem_limit_bytes=vmem_limit),
    )(bmin, bmax, x2d)


# --------------------------------------------------------------------------- #
# Tiled fallback for large activations: min/max reduction + quant pass.       #
# --------------------------------------------------------------------------- #
def _minmax_kernel(x_ref, min_ref, max_ref, mn_acc, mx_acc, *, m_total, tm, nb, arows):
    c = pl.program_id(0)                 # core-parallel axis (v7x megacore)
    j = pl.program_id(1)                 # streaming / reduction axis
    w = x_ref.shape[-1]

    @pl.when(j == 0)
    def _():
        mn_acc[...] = jnp.full(mn_acc.shape, jnp.inf, jnp.float32)
        mx_acc[...] = jnp.full(mx_acc.shape, -jnp.inf, jnp.float32)

    gb = c * nb + j                      # logical (unclamped) block index
    row0 = gb * tm
    is_full = row0 + tm <= m_total       # block entirely inside the array

    # TODO(synk): bf16 inputs could accumulate in bf16 on v6e/v7x (min/max is exact);
    #             kept in f32 for all dtypes for simplicity.
    @pl.when(is_full)
    def _():
        x = x_ref[...].astype(jnp.float32)
        xr = x.reshape(tm // arows, arows, w)
        mn_acc[...] = jnp.minimum(mn_acc[...], xr.min(axis=0))
        mx_acc[...] = jnp.maximum(mx_acc[...], xr.max(axis=0))

    @pl.when(jnp.logical_not(is_full))
    def _():
        # Ragged last block / fully-out-of-range clamped tail block: mask by the
        # logical row index so min/max stay exact. Only this rare block pays for it.
        x = x_ref[...].astype(jnp.float32)
        rows = jax.lax.broadcasted_iota(jnp.int32, (tm, 1), 0) + row0
        valid = rows < m_total
        xm = jnp.where(valid, x, jnp.inf).reshape(tm // arows, arows, w)
        xM = jnp.where(valid, x, -jnp.inf).reshape(tm // arows, arows, w)
        mn_acc[...] = jnp.minimum(mn_acc[...], xm.min(axis=0))
        mx_acc[...] = jnp.maximum(mx_acc[...], xM.max(axis=0))

    @pl.when(j == pl.num_programs(1) - 1)
    def _():
        mn = mn_acc[...]
        mx = mx_acc[...]
        min_ref[...] = jnp.min(jnp.min(mn, axis=0, keepdims=True), axis=1, keepdims=True)
        max_ref[...] = jnp.max(jnp.max(mx, axis=0, keepdims=True), axis=1, keepdims=True)


def _tiled_minmax(x2d, *, tm, ncores, vmem_limit):
    m, w = x2d.shape
    nblocks = pl.cdiv(m, tm)
    ncores = max(1, min(ncores, nblocks))
    nb = pl.cdiv(nblocks, ncores)        # blocks per core; tail slots are masked
    arows = tm if tm <= ACC_ROWS else ACC_ROWS

    kernel = functools.partial(_minmax_kernel, m_total=m, tm=tm, nb=nb, arows=arows)
    pmin, pmax = pl.pallas_call(
        kernel,
        out_shape=(jax.ShapeDtypeStruct((ncores, 1), jnp.float32),
                   jax.ShapeDtypeStruct((ncores, 1), jnp.float32)),
        grid=(ncores, nb),
        in_specs=[pl.BlockSpec(
            (tm, w), lambda c, j: (jnp.minimum(c * nb + j, nblocks - 1), 0))],
        out_specs=(pl.BlockSpec((1, 1), lambda c, j: (c, 0)),
                   pl.BlockSpec((1, 1), lambda c, j: (c, 0))),
        scratch_shapes=[pltpu.VMEM((arows, w), jnp.float32),
                        pltpu.VMEM((arows, w), jnp.float32)],
        compiler_params=pltpu.CompilerParams(
            dimension_semantics=("parallel", "arbitrary"),
            vmem_limit_bytes=vmem_limit),
    )(x2d)
    return pmin.reshape(-1), pmax.reshape(-1)


def _quant_kernel(pmin_ref, pmax_ref, bmin_ref, bmax_ref, x_ref, o_ref,
                  *, n, momentum, update_stats, n_partials):
    # Scalar epilogue folded in (SMEM reads + a handful of scalar ops per block):
    # combine per-core partials -> running-stat update -> scale -> 1/scale. This
    # removes the tiny XLA ops that previously sat between the two pallas_calls.
    bmin = bmin_ref[0]
    bmax = bmax_ref[0]
    if update_stats:
        cur_min = pmin_ref[0]
        cur_max = pmax_ref[0]
        for p in range(1, n_partials):
            cur_min = jnp.minimum(cur_min, pmin_ref[p])
            cur_max = jnp.maximum(cur_max, pmax_ref[p])
        new_min, new_max = _range_update(bmin, bmax, cur_min, cur_max, momentum)
    else:
        new_min, new_max = bmin, bmax
    sat = jnp.maximum(jnp.abs(new_min), jnp.abs(new_max))
    scale = jnp.maximum(sat, 1e-8) / n
    inv = 1.0 / scale                                     # hoisted scalar reciprocal

    x = x_ref[...].astype(jnp.float32)
    q = jnp.clip(jnp.round(x * inv), -n, n - 1.0)
    o_ref[...] = (q * scale).astype(o_ref.dtype)


def _tiled_quant(x2d, pmin, pmax, bmin, bmax, *, n, momentum, update_stats, tm,
                 vmem_limit):
    m, w = x2d.shape
    kernel = functools.partial(_quant_kernel, n=float(n), momentum=float(momentum),
                               update_stats=bool(update_stats),
                               n_partials=int(pmin.shape[0]))
    return pl.pallas_call(
        kernel,
        out_shape=jax.ShapeDtypeStruct(x2d.shape, x2d.dtype),
        grid=(pl.cdiv(m, tm),),
        in_specs=[pl.BlockSpec(memory_space=pltpu.MemorySpace.SMEM),
                  pl.BlockSpec(memory_space=pltpu.MemorySpace.SMEM),
                  pl.BlockSpec(memory_space=pltpu.MemorySpace.SMEM),
                  pl.BlockSpec(memory_space=pltpu.MemorySpace.SMEM),
                  pl.BlockSpec((tm, w), lambda i: (i, 0))],
        out_specs=pl.BlockSpec((tm, w), lambda i: (i, 0)),
        compiler_params=pltpu.CompilerParams(
            dimension_semantics=("parallel",),
            vmem_limit_bytes=vmem_limit),
    )(pmin, pmax, bmin, bmax, x2d)


# --------------------------------------------------------------------------- #
# Wrapper (functional QuantAct.forward).                                      #
# --------------------------------------------------------------------------- #
def quant_act_forward(x, x_min_buf, x_max_buf, *, activation_bit=8,
                      act_range_momentum=0.95, running_stat=True, training=True,
                      quant_mode="symmetric", force_tiled=False, tile_rows=None):
    """Functional QuantAct.forward. Returns ((out, scale), (new_x_min, new_x_max))."""
    # TODO(synk): per_channel, percentile, identity (+ fixedpoint_mul with
    #             pre_act_scaling_factor), specified_min/max and clamp_only paths
    #             are not implemented here.
    orig_shape = x.shape
    total = int(x.size)
    n = 2 ** (activation_bit - 1) - 1
    update_stats = bool(running_stat and training)
    bmin = x_min_buf.astype(jnp.float32).reshape(1)
    bmax = x_max_buf.astype(jnp.float32).reshape(1)

    if quant_mode == "none":
        # No quant work to fuse; range tracking kept in plain JAX for this mode.
        if update_stats:
            cur_min = jnp.min(x).astype(jnp.float32).reshape(1)
            cur_max = jnp.max(x).astype(jnp.float32).reshape(1)
            new_min, new_max = _range_update(bmin, bmax, cur_min, cur_max,
                                             act_range_momentum)
        else:
            new_min, new_max = bmin, bmax
        return (x, None), (new_min, new_max)

    assert quant_mode == "symmetric", f"unsupported quant mode: {quant_mode}"

    vmem_limit, ncores = _chip_config()
    itemsize = jnp.dtype(x.dtype).itemsize

    # Lane-dense, metadata-only reshape (no pad / copy / extra HBM pass).
    w = _pick_width(total)
    if w is None:
        # TODO(synk): ragged totals (not a multiple of 128) only use the fused
        #             whole-array path with a single-row layout.
        x2d = x.reshape(1, total)
    else:
        x2d = x.reshape(total // w, w)

    # Fused path budget: native in + native out + ~3 f32 temporaries in VMEM.
    fused_bytes = total * (2 * itemsize + 12)
    use_fused = (w is None) or ((not force_tiled) and fused_bytes <= vmem_limit)

    if use_fused:
        out2d, scale, new_min, new_max = _fused_call(
            x2d, bmin, bmax, n=n, momentum=act_range_momentum,
            update_stats=update_stats, vmem_limit=vmem_limit)
        scale = scale.reshape(1)
        new_min = new_min.reshape(1)
        new_max = new_max.reshape(1)
    else:
        m = x2d.shape[0]
        tm = _pick_tile_rows(m, w, itemsize, tile_rows, vmem_limit)
        if update_stats:
            pmin, pmax = _tiled_minmax(x2d, tm=tm, ncores=ncores,
                                       vmem_limit=vmem_limit)
            # Returned buffers/scale: tiny JAX ops that do NOT gate the quant kernel
            # (the quant kernel recomputes the same scalars from SMEM inputs).
            cur_min = jnp.min(pmin).reshape(1)
            cur_max = jnp.max(pmax).reshape(1)
            new_min, new_max = _range_update(bmin, bmax, cur_min, cur_max,
                                             act_range_momentum)
        else:
            pmin, pmax = bmin, bmax          # unused by the kernel in this mode
            new_min, new_max = bmin, bmax
        scale = jnp.maximum(jnp.maximum(jnp.abs(new_min), jnp.abs(new_max)),
                            1e-8) / n
        out2d = _tiled_quant(x2d, pmin, pmax, bmin, bmax, n=n,
                             momentum=act_range_momentum,
                             update_stats=update_stats, tm=tm,
                             vmem_limit=vmem_limit)

    out = out2d.reshape(orig_shape)
    return (out, scale), (new_min, new_max)


# --------------------------------------------------------------------------- #
# Pure-JAX reference + self-test.                                             #
# --------------------------------------------------------------------------- #
def _reference(x, bmin, bmax, bit=8, momentum=0.95, update_stats=True):
    n = 2 ** (bit - 1) - 1
    bmin = bmin.astype(jnp.float32).reshape(1)
    bmax = bmax.astype(jnp.float32).reshape(1)
    if update_stats:
        xm = jnp.min(x).astype(jnp.float32).reshape(1)
        xM = jnp.max(x).astype(jnp.float32).reshape(1)
        same = bmin == bmax
        if momentum == -1:
            um, uM = jnp.minimum(bmin, xm), jnp.maximum(bmax, xM)
        else:
            um = bmin * momentum + xm * (1.0 - momentum)
            uM = bmax * momentum + xM * (1.0 - momentum)
        new_min = jnp.where(same, bmin + xm, um)
        new_max = jnp.where(same, bmax + xM, uM)
    else:
        new_min, new_max = bmin, bmax
    s = jnp.maximum(jnp.maximum(jnp.abs(new_min), jnp.abs(new_max)), 1e-8) / n
    inv = 1.0 / s    # same multiply-by-reciprocal formulation as the kernels
    q = jnp.clip(jnp.round(x * inv), -n, n - 1.0)
    return q * s, s, new_min, new_max


if __name__ == "__main__":
    key = jax.random.PRNGKey(0)
    k1, k2 = jax.random.split(key)

    def check(tag, got, want, atol):
        ok = bool(jnp.allclose(got, want, atol=atol))
        err = float(jnp.max(jnp.abs(got - want)))
        assert ok, f"{tag} mismatch: max abs err {err}"

    # --- Test 1: fused single-call path (typical activation-sized tensor). ------
    x1 = jax.random.normal(k1, (2, 4, 16, 16), dtype=jnp.float32)
    zmin = jnp.zeros((1,), jnp.float32)
    zmax = jnp.zeros((1,), jnp.float32)
    (y1, s1), (mn1, mx1) = quant_act_forward(x1, zmin, zmax, activation_bit=8)
    y1 = jax.block_until_ready(y1)
    r1, rs1, rmn1, rmx1 = _reference(x1, zmin, zmax)
    check("fused out", y1, r1, 1e-6)
    check("fused scale", s1, rs1, 1e-8)
    check("fused x_min", mn1, rmn1, 1e-8)
    check("fused x_max", mx1, rmx1, 1e-8)

    # --- Test 2: tiled path forced on the same tiny input (partial block). ------
    (y2, s2), (mn2, mx2) = quant_act_forward(x1, zmin, zmax, activation_bit=8,
                                             force_tiled=True, tile_rows=8)
    y2 = jax.block_until_ready(y2)
    check("tiled-small out", y2, r1, 1e-6)
    check("tiled-small scale", s2, rs1, 1e-8)
    check("tiled-small x_min", mn2, rmn1, 1e-8)
    check("tiled-small x_max", mx2, rmx1, 1e-8)

    # --- Test 3: tiled path, multiple blocks + ragged tail + momentum branch. ---
    x3 = jax.random.normal(k2, (2, 4, 104, 128), dtype=jnp.float32)
    bmin3 = jnp.full((1,), -0.25, jnp.float32)
    bmax3 = jnp.full((1,), 0.75, jnp.float32)
    (y3, s3), (mn3, mx3) = quant_act_forward(x3, bmin3, bmax3, activation_bit=8,
                                             force_tiled=True)
    y3 = jax.block_until_ready(y3)
    r3, rs3, rmn3, rmx3 = _reference(x3, bmin3, bmax3)
    check("tiled out", y3, r3, 1e-6)
    check("tiled scale", s3, rs3, 1e-8)
    check("tiled x_min", mn3, rmn3, 1e-8)
    check("tiled x_max", mx3, rmx3, 1e-8)

    print("KERNEL_OK")
</pallas_src>

<mosaic_0001>
module attributes {stable_mosaic.version = 11 : i64} {
  func.func @_fused_kernel(%arg0: memref<1xf32, #tpu.memory_space<smem>>, %arg1: memref<1xf32, #tpu.memory_space<smem>>, %arg2: memref<2x1024xf32, #tpu.memory_space<vmem>>, %arg3: memref<2x1024xf32, #tpu.memory_space<vmem>>, %arg4: memref<1x1xf32, #tpu.memory_space<vmem>>, %arg5: memref<1x1xf32, #tpu.memory_space<vmem>>, %arg6: memref<1x1xf32, #tpu.memory_space<vmem>>) attributes {dimension_semantics = [], scalar_prefetch = 0 : i64, scratch_operands = 0 : i64, tpu.core_type = #tpu.core_type<tc>} {
    %c0 = arith.constant 0 : index
    %c0_0 = arith.constant 0 : index
    %0 = vector.load %arg2[%c0, %c0_0] : memref<2x1024xf32, #tpu.memory_space<vmem>>, vector<2x1024xf32>
    %cst = arith.constant 0.000000e+00 : f32
    %1 = vector.broadcast %cst : f32 to vector<1x1xf32>
    %c0_1 = arith.constant 0 : index
    %2 = memref.load %arg0[%c0_1] : memref<1xf32, #tpu.memory_space<smem>>
    %3 = vector.broadcast %2 : f32 to vector<1x1xf32>
    %4 = arith.addf %1, %3 : vector<1x1xf32>
    %c0_2 = arith.constant 0 : index
    %5 = memref.load %arg1[%c0_2] : memref<1xf32, #tpu.memory_space<smem>>
    %6 = vector.broadcast %5 : f32 to vector<1x1xf32>
    %7 = arith.addf %1, %6 : vector<1x1xf32>
    %cst_3 = arith.constant dense<0x7F800000> : vector<1024xf32>
    %8 = vector.multi_reduction <minimumf>, %0, %cst_3 [0] : vector<2x1024xf32> to vector<1024xf32>
    %9 = vector.shape_cast %8 : vector<1024xf32> to vector<1x1024xf32>
    %cst_4 = arith.constant dense<0x7F800000> : vector<1xf32>
    %10 = vector.multi_reduction <minimumf>, %9, %cst_4 [1] : vector<1x1024xf32> to vector<1xf32>
    %11 = vector.shape_cast %10 : vector<1xf32> to vector<1x1xf32>
    %cst_5 = arith.constant dense<0xFF800000> : vector<1024xf32>
    %12 = vector.multi_reduction <maximumf>, %0, %cst_5 [0] : vector<2x1024xf32> to vector<1024xf32>
    %13 = vector.shape_cast %12 : vector<1024xf32> to vector<1x1024xf32>
    %cst_6 = arith.constant dense<0xFF800000> : vector<1xf32>
    %14 = vector.multi_reduction <maximumf>, %13, %cst_6 [1] : vector<1x1024xf32> to vector<1xf32>
    %15 = vector.shape_cast %14 : vector<1xf32> to vector<1x1xf32>
    %16 = arith.cmpf oeq, %4, %7 : vector<1x1xf32>
    %cst_7 = arith.constant 0.949999988 : f32
    %17 = vector.broadcast %cst_7 : f32 to vector<1x1xf32>
    %18 = arith.mulf %4, %17 : vector<1x1xf32>
    %cst_8 = arith.constant 5.000000e-02 : f32
    %19 = vector.broadcast %cst_8 : f32 to vector<1x1xf32>
    %20 = arith.mulf %11, %19 : vector<1x1xf32>
    %21 = arith.addf %18, %20 : vector<1x1xf32>
    %cst_9 = arith.constant 0.949999988 : f32
    %22 = vector.broadcast %cst_9 : f32 to vector<1x1xf32>
    %23 = arith.mulf %7, %22 : vector<1x1xf32>
    %cst_10 = arith.constant 5.000000e-02 : f32
    %24 = vector.broadcast %cst_10 : f32 to vector<1x1xf32>
    %25 = arith.mulf %15, %24 : vector<1x1xf32>
    %26 = arith.addf %23, %25 : vector<1x1xf32>
    %27 = arith.addf %4, %11 : vector<1x1xf32>
    %28 = arith.select %16, %27, %21 : vector<1x1xi1>, vector<1x1xf32>
    %29 = arith.addf %7, %15 : vector<1x1xf32>
    %30 = arith.select %16, %29, %26 : vector<1x1xi1>, vector<1x1xf32>
    %31 = math.absf %28 : vector<1x1xf32>
    %32 = math.absf %30 : vector<1x1xf32>
    %33 = arith.maximumf %31, %32 : vector<1x1xf32>
    %cst_11 = arith.constant 9.99999993E-9 : f32
    %34 = vector.broadcast %cst_11 : f32 to vector<1x1xf32>
    %35 = arith.maximumf %33, %34 : vector<1x1xf32>
    %cst_12 = arith.constant 1.270000e+02 : f32
    %36 = vector.broadcast %cst_12 : f32 to vector<1x1xf32>
    %37 = arith.divf %35, %36 : vector<1x1xf32>
    %cst_13 = arith.constant 1.000000e+00 : f32
    %38 = vector.broadcast %cst_13 : f32 to vector<1x1xf32>
    %39 = arith.divf %38, %37 : vector<1x1xf32>
    %40 = vector.broadcast %39 : vector<1x1xf32> to vector<2x1024xf32>
    %41 = arith.mulf %0, %40 : vector<2x1024xf32>
    %42 = math.roundeven %41 : vector<2x1024xf32>
    %cst_14 = arith.constant -1.270000e+02 : f32
    %cst_15 = arith.constant 1.260000e+02 : f32
    %43 = vector.broadcast %cst_14 : f32 to vector<2x1024xf32>
    %44 = arith.maximumf %43, %42 : vector<2x1024xf32>
    %45 = vector.broadcast %cst_15 : f32 to vector<2x1024xf32>
    %46 = arith.minimumf %45, %44 : vector<2x1024xf32>
    %47 = vector.broadcast %37 : vector<1x1xf32> to vector<2x1024xf32>
    %48 = arith.mulf %46, %47 : vector<2x1024xf32>
    %c0_16 = arith.constant 0 : index
    %c0_17 = arith.constant 0 : index
    %49 = vector.load %arg3[%c0_16, %c0_17] : memref<2x1024xf32, #tpu.memory_space<vmem>>, vector<2x1024xf32>
    tpu.vector_store %arg3[%c0_16, %c0_17], %48 {strides = array<i32>} : memref<2x1024xf32, #tpu.memory_space<vmem>>, vector<2x1024xf32>,
    %c0_18 = arith.constant 0 : index
    %c0_19 = arith.constant 0 : index
    %50 = vector.load %arg4[%c0_18, %c0_19] : memref<1x1xf32, #tpu.memory_space<vmem>>, vector<1x1xf32>
    tpu.vector_store %arg4[%c0_18, %c0_19], %37 {strides = array<i32>} : memref<1x1xf32, #tpu.memory_space<vmem>>, vector<1x1xf32>,
    %c0_20 = arith.constant 0 : index
    %c0_21 = arith.constant 0 : index
    %51 = vector.load %arg5[%c0_20, %c0_21] : memref<1x1xf32, #tpu.memory_space<vmem>>, vector<1x1xf32>
    tpu.vector_store %arg5[%c0_20, %c0_21], %28 {strides = array<i32>} : memref<1x1xf32, #tpu.memory_space<vmem>>, vector<1x1xf32>,
    %c0_22 = arith.constant 0 : index
    %c0_23 = arith.constant 0 : index
    %52 = vector.load %arg6[%c0_22, %c0_23] : memref<1x1xf32, #tpu.memory_space<vmem>>, vector<1x1xf32>
    tpu.vector_store %arg6[%c0_22, %c0_23], %30 {strides = array<i32>} : memref<1x1xf32, #tpu.memory_space<vmem>>, vector<1x1xf32>,
    return
  }
}

</mosaic_0001>

<llo_original>
// kernel: tpu_custom_call.1
$region0: #{tpu_custom_call.1}
  #allocation0 [shape = 'u32[]', space=smem, size = 0x4, offset = 0x4, fixed_abs, tag = 'smem constant byte address 0x4 - core index']
  #allocation1 [shape = 'u32[144,128]{1,0:T(1,128)}', space=vmem, size = 0x12000, scoped, tag = 'internal scratch']
  #allocation2 [shape = 'f32[1]{0:T(128)S(6)}', space=smem, size = 0x200, scoped, tag = 'scoped memory for tpu_custom_call.1']
  #allocation3 [shape = 'f32[1]{0:T(128)S(6)}', space=smem, size = 0x200, scoped, tag = 'scoped memory for tpu_custom_call.1']
  %s0 = inlined_call_operand.<no memory space> [shape: f32[1], index: 0, kind: input, shape index: {}]
  %s1 = inlined_call_operand.<no memory space> [shape: f32[1], index: 1, kind: input, shape index: {}]
  %s2 = inlined_call_operand.hbm [shape: f32[2,1024], index: 2, kind: input, shape index: {}]
  %s3 = inlined_call_operand.hbm [shape: f32[2,1024], index: 3, kind: output, shape index: {0}]
  %s4 = inlined_call_operand.hbm [shape: f32[1,1], index: 4, kind: output, shape index: {1}]
  %s5 = inlined_call_operand.hbm [shape: f32[1,1], index: 5, kind: output, shape index: {2}]
  %s6 = inlined_call_operand.hbm [shape: f32[1,1], index: 6, kind: output, shape index: {3}]
  %7 = xla_tuple %s3, %s4, %s5, %s6
  %s8 = sld [smem:[#allocation0]]
  $region50: #{tpu_custom_call.1} parent=0
    _
  %s10 = ssub.s32 1, %s8
  %s11 = scalar_select 0, %s10, %s8
  %12 = sst [smem:[#allocation2]] %s0
  %13 = sst [smem:[#allocation3]] %s1
  $region1: #{tpu_custom_call.1} parent=0
    #allocation4 [shape = 'u8[8192]{0}', space=vmem, size = 0x2000, scoped, tag = 'input window, operand 2, single buffered']
    #allocation5 [shape = 's32[1]{0}', space=sflag, size = 0x4, scoped, tag = 'scoped memory for tpu_custom_call.1']
    #allocation6 [shape = 's32[1]{0}', space=sflag, size = 0x4, scoped, tag = 'scoped memory for tpu_custom_call.1']
    #allocation7 [shape = 'u8[8192]{0}', space=vmem, size = 0x2000, scoped, tag = 'output window, operand 0, single buffered']
    #allocation8 [shape = 'u8[512]{0}', space=vmem, size = 0x400, scoped, tag = 'output window, operand 1, single buffered']
    #allocation9 [shape = 's32[1]{0}', space=sflag, size = 0x4, scoped, tag = 'scoped memory for tpu_custom_call.1']
    #allocation10 [shape = 'u8[512]{0}', space=vmem, size = 0x400, scoped, tag = 'output window, operand 2, single buffered']
    #allocation11 [shape = 'u8[512]{0}', space=vmem, size = 0x400, scoped, tag = 'output window, operand 3, single buffered']
    #allocation12 [shape = 's32[1]{0}', space=sflag, size = 0x4, scoped, tag = 'scoped memory for tpu_custom_call.1']
    %14 = vsyncpa [#allocation5], 0
    %15 = vsyncpa [#allocation6], 0
    %16 = vsyncpa [#allocation9], 0
    %17 = vsyncpa [#allocation12], 0
    // Predicated region
    $region2: #{tpu_custom_call.1} parent=1 // pred_check
      _
    $region3: #{tpu_custom_call.1} parent=1 // pred_check_branch
      %19 = sbr.rel (0) target = $region5
    $region4: #{tpu_custom_call.1} parent=1 // pred_region
      _
    $region5: #{tpu_custom_call.1} parent=1 // pred_fallthru
      _
    // Predicated region
    $region6: #{tpu_custom_call.1} parent=1 // pred_check
      _
    $region7: #{tpu_custom_call.1} parent=1 // pred_check_branch
      %21 = sbr.rel (0) target = $region9
    $region8: #{tpu_custom_call.1} parent=1 // pred_region
      _
    $region9: #{tpu_custom_call.1} parent=1 // pred_fallthru
      _
    // Predicated region
    $region10: #{tpu_custom_call.1} parent=1 // pred_check
      _
    $region11: #{tpu_custom_call.1} parent=1 // pred_check_branch
      %23 = sbr.rel (0) target = $region13
    $region12: #{tpu_custom_call.1} parent=1 // pred_region
      %s25 = ssub.s32 256, 256
      %26 = vsyncadd [#allocation5], %s25
      %s28 = sshll.u32 [#allocation4], 4
      %s29 = int_to_ptr.vmem [resolvable:$true] %s28
      %31 = dma.hbm_to_vmem [thread:$0]  %s2, 256, %s29, [#allocation5]
    $region13: #{tpu_custom_call.1} parent=1 // pred_fallthru
      _
    // Predicated region
    $region14: #{tpu_custom_call.1} parent=1 // pred_check
      _
    $region15: #{tpu_custom_call.1} parent=1 // pred_check_branch
      %33 = sbr.rel (0) target = $region17
    $region16: #{tpu_custom_call.1} parent=1 // pred_region
      %34 = dma.done [#allocation5], 256
    $region17: #{tpu_custom_call.1} parent=1 // pred_fallthru
      _
    %v35 = vld [vmem:[#allocation4] sm:$0xff]
    %v36 = vld [vmem:[#allocation4 + $0x8] sm:$0xff]
    %s37 = sld [smem:[#allocation2]]
    %v38 = vstv %s37
    %v39 = vadd.f32 %v38, 0.0
    %s40 = sld [smem:[#allocation3]]
    %v41 = vstv %s40
    %v42 = vadd.f32 %v41, 0.0
    %v45 = vcombine.high %v35, %v35
    %v47 = vunpack.c.l.s4 1983009808
    %v48 = vunpack.c.0.s8 %v47
    %v49 = vlaneseq
    %v50 = vshrl.u32 %v49, 7
    %v51 = vsub.s32 %v48, %v50
    %v52 = vrot.slane %v35, %v51
    %v54 = vunpack.c.l.s4 1983009808
    %v55 = vunpack.c.0.s8 %v54
    %v56 = vlaneseq
    %v57 = vshrl.u32 %v56, 7
    %v58 = vsub.s32 %v55, %v57
    %v59 = vrot.slane %v45, %v58
    %v60 = vcombine.high %v52, %v52
    %v61 = vcombine.high %v59, %v59
    %v62 = vcombine.high %v36, %v36
    %v64 = vunpack.c.l.s4 1983009808
    %v65 = vunpack.c.0.s8 %v64
    %v66 = vlaneseq
    %v67 = vshrl.u32 %v66, 7
    %v68 = vsub.s32 %v65, %v67
    %v69 = vrot.slane %v36, %v68
    %v71 = vunpack.c.l.s4 1983009808
    %v72 = vunpack.c.0.s8 %v71
    %v73 = vlaneseq
    %v74 = vshrl.u32 %v73, 7
    %v75 = vsub.s32 %v72, %v74
    %v76 = vrot.slane %v62, %v75
    %v77 = vcombine.high %v69, %v69
    %v78 = vcombine.high %v76, %v76
    %vm87 = vcmask 1041408
    %v88 = vsel %vm87, %v52, inf
    %v89 = vrot.slane %v88, 4
    %v90 = vmin.f32 %v88, %v89
    %v91 = vrot.slane %v90, 2
    %v92 = vmin.f32 %v90, %v91
    %v93 = vrot.slane %v92, 1
    %v94 = vmin.f32 %v92, %v93
    %v95 = vsel %vm87, %v60, inf
    %v96 = vrot.slane %v95, 4
    %v97 = vmin.f32 %v95, %v96
    %v98 = vrot.slane %v97, 2
    %v99 = vmin.f32 %v97, %v98
    %v100 = vrot.slane %v99, 1
    %v101 = vmin.f32 %v99, %v100
    %v102 = vsel %vm87, %v59, inf
    %v103 = vrot.slane %v102, 4
    %v104 = vmin.f32 %v102, %v103
    %v105 = vrot.slane %v104, 2
    %v106 = vmin.f32 %v104, %v105
    %v107 = vrot.slane %v106, 1
    %v108 = vmin.f32 %v106, %v107
    %v109 = vsel %vm87, %v61, inf
    %v110 = vrot.slane %v109, 4
    %v111 = vmin.f32 %v109, %v110
    %v112 = vrot.slane %v111, 2
    %v113 = vmin.f32 %v111, %v112
    %v114 = vrot.slane %v113, 1
    %v115 = vmin.f32 %v113, %v114
    %v116 = vsel %vm87, %v69, inf
    %v117 = vrot.slane %v116, 4
    %v118 = vmin.f32 %v116, %v117
    %v119 = vrot.slane %v118, 2
    %v120 = vmin.f32 %v118, %v119
    %v121 = vrot.slane %v120, 1
    %v122 = vmin.f32 %v120, %v121
    %v123 = vsel %vm87, %v77, inf
    %v124 = vrot.slane %v123, 4
    %v125 = vmin.f32 %v123, %v124
    %v126 = vrot.slane %v125, 2
    %v127 = vmin.f32 %v125, %v126
    %v128 = vrot.slane %v127, 1
    %v129 = vmin.f32 %v127, %v128
    %v130 = vsel %vm87, %v76, inf
    %v131 = vrot.slane %v130, 4
    %v132 = vmin.f32 %v130, %v131
    %v133 = vrot.slane %v132, 2
    %v134 = vmin.f32 %v132, %v133
    %v135 = vrot.slane %v134, 1
    %v136 = vmin.f32 %v134, %v135
    %v137 = vsel %vm87, %v78, inf
    %v138 = vrot.slane %v137, 4
    %v139 = vmin.f32 %v137, %v138
    %v140 = vrot.slane %v139, 2
    %v141 = vmin.f32 %v139, %v140
    %v142 = vrot.slane %v141, 1
    %v143 = vmin.f32 %v141, %v142
    %v144 = vmin.f32 %v94, %v122
    %v145 = vmin.f32 %v101, %v129
    %v146 = vmin.f32 %v108, %v136
    %v147 = vmin.f32 %v115, %v143
    %v148 = vmin.f32 %v144, %v145
    %v149 = vmin.f32 %v146, %v147
    %v150 = vmin.f32 %v148, %v149
    %151 = vmin.xlane.f32.xlu0 %v150
    %v152 = vpop.xlane.xlu0 %151
    %v153 = vsel %vm87, %v52, -inf
    %v154 = vrot.slane %v153, 4
    %v155 = vmax.f32 %v153, %v154
    %v156 = vrot.slane %v155, 2
    %v157 = vmax.f32 %v155, %v156
    %v158 = vrot.slane %v157, 1
    %v159 = vmax.f32 %v157, %v158
    %v160 = vsel %vm87, %v60, -inf
    %v161 = vrot.slane %v160, 4
    %v162 = vmax.f32 %v160, %v161
    %v163 = vrot.slane %v162, 2
    %v164 = vmax.f32 %v162, %v163
    %v165 = vrot.slane %v164, 1
    %v166 = vmax.f32 %v164, %v165
    %v167 = vsel %vm87, %v59, -inf
    %v168 = vrot.slane %v167, 4
    %v169 = vmax.f32 %v167, %v168
    %v170 = vrot.slane %v169, 2
    %v171 = vmax.f32 %v169, %v170
    %v172 = vrot.slane %v171, 1
    %v173 = vmax.f32 %v171, %v172
    %v174 = vsel %vm87, %v61, -inf
    %v175 = vrot.slane %v174, 4
    %v176 = vmax.f32 %v174, %v175
    %v177 = vrot.slane %v176, 2
    %v178 = vmax.f32 %v176, %v177
    %v179 = vrot.slane %v178, 1
    %v180 = vmax.f32 %v178, %v179
    %v181 = vsel %vm87, %v69, -inf
    %v182 = vrot.slane %v181, 4
    %v183 = vmax.f32 %v181, %v182
    %v184 = vrot.slane %v183, 2
    %v185 = vmax.f32 %v183, %v184
    %v186 = vrot.slane %v185, 1
    %v187 = vmax.f32 %v185, %v186
    %v188 = vsel %vm87, %v77, -inf
    %v189 = vrot.slane %v188, 4
    %v190 = vmax.f32 %v188, %v189
    %v191 = vrot.slane %v190, 2
    %v192 = vmax.f32 %v190, %v191
    %v193 = vrot.slane %v192, 1
    %v194 = vmax.f32 %v192, %v193
    %v195 = vsel %vm87, %v76, -inf
    %v196 = vrot.slane %v195, 4
    %v197 = vmax.f32 %v195, %v196
    %v198 = vrot.slane %v197, 2
    %v199 = vmax.f32 %v197, %v198
    %v200 = vrot.slane %v199, 1
    %v201 = vmax.f32 %v199, %v200
    %v202 = vsel %vm87, %v78, -inf
    %v203 = vrot.slane %v202, 4
    %v204 = vmax.f32 %v202, %v203
    %v205 = vrot.slane %v204, 2
    %v206 = vmax.f32 %v204, %v205
    %v207 = vrot.slane %v206, 1
    %v208 = vmax.f32 %v206, %v207
    %v209 = vmax.f32 %v159, %v187
    %v210 = vmax.f32 %v166, %v194
    %v211 = vmax.f32 %v173, %v201
    %v212 = vmax.f32 %v180, %v208
    %v213 = vmax.f32 %v209, %v210
    %v214 = vmax.f32 %v211, %v212
    %v215 = vmax.f32 %v213, %v214
    %216 = vmax.xlane.f32.xlu0 %v215
    %v217 = vpop.xlane.xlu0 %216
    %vm218 = vcmp.eq.f32.partialorder %v39, %v42
    %v219 = vmul.f32 %v39, 0.95
    %v220 = vmul.f32 %v152, 0.05
    %v221 = vadd.f32 %v219, %v220
    %v222 = vmul.f32 %v42, 0.95
    %v223 = vmul.f32 %v217, 0.05
    %v224 = vadd.f32 %v222, %v223
    %v225 = vadd.f32 %v39, %v152
    %v226 = vsel %vm218, %v225, %v221
    %v227 = vadd.f32 %v42, %v217
    %v228 = vsel %vm218, %v227, %v224
    %v229 = vand.u32 2147483647, %v226
    %v230 = vand.u32 2147483647, %v228
    %v231 = vmax.f32 %v229, %v230
    %v232 = vmax.f32 %v231, 1e-08
    %v233 = vrcp.pop 127.0
    %v234 = vmul.f32 %v232, %v233
    %v235 = vrcp.pop %v234
    %v236 = vmul.f32 1.0, %v235
    %v237 = vmul.f32 %v35, %v236
    %v238 = vmul.f32 %v36, %v236
    %v239 = vround.ne.pseudo %v237
    %v240 = vround.ne.pseudo %v238
    %v241 = vmax.f32 %v239, -127.0
    %v242 = vmax.f32 %v240, -127.0
    %v243 = vmin.f32 %v241, 126.0
    %v244 = vmin.f32 %v242, 126.0
    %v245 = vmul.f32 %v243, %v234
    %v246 = vmul.f32 %v244, %v234
    %247 = vst [vmem:[#allocation7] sm:$0xff] %v245
    %248 = vst [vmem:[#allocation7 + $0x8] sm:$0xff] %v246
    %vm249 = vcmask 0
    %250 = vst.msk [vmem:[#allocation8] sm:$0x1] %vm249, %v234
    %251 = vst.msk [vmem:[#allocation10] sm:$0x1] %vm249, %v226
    %252 = vst.msk [vmem:[#allocation11] sm:$0x1] %vm249, %v228
    // Predicated region
    $region18: #{tpu_custom_call.1} parent=1 // pred_check
      _
    $region19: #{tpu_custom_call.1} parent=1 // pred_check_branch
      %254 = sbr.rel (0) target = $region21
    $region20: #{tpu_custom_call.1} parent=1 // pred_region
      %s256 = ssub.s32 256, 256
      %257 = vsyncadd [#allocation6], %s256
      %s259 = sshll.u32 [#allocation7], 4
      %s260 = int_to_ptr.vmem [resolvable:$true] %s259
      %262 = dma.vmem_to_hbm [thread:$0]  %s260, 256, %s3, [#allocation6]
    $region21: #{tpu_custom_call.1} parent=1 // pred_fallthru
      _
    // Predicated region
    $region22: #{tpu_custom_call.1} parent=1 // pred_check
      _
    $region23: #{tpu_custom_call.1} parent=1 // pred_check_branch
      %264 = sbr.rel (0) target = $region25
    $region24: #{tpu_custom_call.1} parent=1 // pred_region
      %s266 = ssub.s32 16, 16
      %267 = vsyncadd [#allocation9], %s266
      %s269 = sshll.u32 [#allocation8], 4
      %s270 = int_to_ptr.vmem [resolvable:$true] %s269
      %272 = dma.vmem_to_hbm [thread:$0]  %s270, 16, %s4, [#allocation9]
    $region25: #{tpu_custom_call.1} parent=1 // pred_fallthru
      _
    // Predicated region
    $region26: #{tpu_custom_call.1} parent=1 // pred_check
      _
    $region27: #{tpu_custom_call.1} parent=1 // pred_check_branch
      %274 = sbr.rel (0) target = $region29
    $region28: #{tpu_custom_call.1} parent=1 // pred_region
      %s276 = ssub.s32 16, 16
      %277 = vsyncadd [#allocation9], %s276
      %s279 = sshll.u32 [#allocation10], 4
      %s280 = int_to_ptr.vmem [resolvable:$true] %s279
      %282 = dma.vmem_to_hbm [thread:$0]  %s280, 16, %s5, [#allocation9]
    $region29: #{tpu_custom_call.1} parent=1 // pred_fallthru
      _
    // Predicated region
    $region30: #{tpu_custom_call.1} parent=1 // pred_check
      _
    $region31: #{tpu_custom_call.1} parent=1 // pred_check_branch
      %284 = sbr.rel (0) target = $region33
    $region32: #{tpu_custom_call.1} parent=1 // pred_region
      %s286 = ssub.s32 16, 16
      %287 = vsyncadd [#allocation12], %s286
      %s289 = sshll.u32 [#allocation11], 4
      %s290 = int_to_ptr.vmem [resolvable:$true] %s289
      %292 = dma.vmem_to_hbm [thread:$0]  %s290, 16, %s6, [#allocation12]
    $region33: #{tpu_custom_call.1} parent=1 // pred_fallthru
      _
    // Predicated region
    $region34: #{tpu_custom_call.1} parent=1 // pred_check
      _
    $region35: #{tpu_custom_call.1} parent=1 // pred_check_branch
      %294 = sbr.rel (0) target = $region37
    $region36: #{tpu_custom_call.1} parent=1 // pred_region
      %295 = dma.done [#allocation6], 256
    $region37: #{tpu_custom_call.1} parent=1 // pred_fallthru
      _
    // Predicated region
    $region38: #{tpu_custom_call.1} parent=1 // pred_check
      _
    $region39: #{tpu_custom_call.1} parent=1 // pred_check_branch
      %297 = sbr.rel (0) target = $region41
    $region40: #{tpu_custom_call.1} parent=1 // pred_region
      %298 = dma.done [#allocation9], 16
    $region41: #{tpu_custom_call.1} parent=1 // pred_fallthru
      _
    // Predicated region
    $region42: #{tpu_custom_call.1} parent=1 // pred_check
      _
    $region43: #{tpu_custom_call.1} parent=1 // pred_check_branch
      %300 = sbr.rel (0) target = $region45
    $region44: #{tpu_custom_call.1} parent=1 // pred_region
      %301 = dma.done [#allocation9], 16
    $region45: #{tpu_custom_call.1} parent=1 // pred_fallthru
      _
    // Predicated region
    $region46: #{tpu_custom_call.1} parent=1 // pred_check
      _
    $region47: #{tpu_custom_call.1} parent=1 // pred_check_branch
      %303 = sbr.rel (0) target = $region49
    $region48: #{tpu_custom_call.1} parent=1 // pred_region
      %304 = dma.done [#allocation12], 16
    $region49: #{tpu_custom_call.1} parent=1 // pred_fallthru
      _
    %305 = vsyncpa [#allocation5], 1
    %306 = vsyncpa [#allocation6], 1
    %307 = vsyncpa [#allocation9], 1
    %308 = vsyncpa [#allocation12], 1

</llo_original>
